<compile_context>
chip_gen: v7x
topology: tpu7x:2x2x1
jax: 0.10.0
libtpu: 0.0.40
codegen_flags: <defaults>
</compile_context>

<pallas_src>
import jax
import jax.numpy as jnp
from jax.experimental import pallas as pl
from jax.experimental.pallas import tpu as pltpu

LANES = 128
SUBLANES = 8


def _make_kernel(n_true, block_rows, bps, needs_mask):
    def kernel(o_ref, t_ref, inter_out, denom_out, inter_acc, denom_acc):
        split = pl.program_id(0)
        step = pl.program_id(1)

        @pl.when(step == 0)
        def _init():
            inter_acc[...] = jnp.zeros_like(inter_acc)
            denom_acc[...] = jnp.zeros_like(denom_acc)

        o = o_ref[...].astype(jnp.float32)
        t = t_ref[...].astype(jnp.float32)
        # sigmoid(x) == 0.5*tanh(0.5*x) + 0.5 : a single EUP transcendental.
        p = 0.5 * jnp.tanh(0.5 * o) + 0.5

        if needs_mask:
            # Logical (pre-clamp) block index -> global element index.  Anything at
            # or beyond the true element count (wrapper pad, Pallas partial-block
            # garbage, or the clamped redundant block of an uneven core split)
            # contributes exactly zero.
            logical_block = split * bps + step
            base = logical_block * (block_rows * LANES)
            row_ids = jax.lax.broadcasted_iota(jnp.int32, (block_rows, LANES), 0)
            lane_ids = jax.lax.broadcasted_iota(jnp.int32, (block_rows, LANES), 1)
            gidx = base + row_ids * LANES + lane_ids
            valid = gidx < n_true
            p = jnp.where(valid, p, 0.0)
            t = jnp.where(valid, t, 0.0)

        # Keep the (8,128) vreg shape: reducing the leading axis is pure VPU adds;
        # no per-step cross-lane (XLU) work.
        p3 = p.reshape(block_rows // SUBLANES, SUBLANES, LANES)
        t3 = t.reshape(block_rows // SUBLANES, SUBLANES, LANES)
        inter_acc[...] += jnp.sum(p3 * t3, axis=0)
        denom_acc[...] += jnp.sum(p3 + t3, axis=0)

        @pl.when(step == pl.num_programs(1) - 1)
        def _finalize():
            # Only two cross-lane reductions per split, at the very end.
            inter_out[...] = jnp.sum(inter_acc[...]).reshape(1, 1, 1)
            denom_out[...] = jnp.sum(denom_acc[...]).reshape(1, 1, 1)

    return kernel


def _round_up(x, m):
    return -(-x // m) * m


def dice_loss(outputs, targets, *, max_block_rows=4096):
    """1 - dice(sigmoid(outputs), targets).  Any same-size inputs, native dtypes."""
    smooth = 1.0

    o = outputs.reshape(-1)
    t = targets.reshape(-1)
    if o.dtype == jnp.bool_:
        o = o.astype(jnp.uint8)
    if t.dtype == jnp.bool_:
        t = t.astype(jnp.uint8)
    n = o.shape[0]

    # Sublane alignment (rows) that keeps the tile native for the narrowest input
    # dtype: f32 -> 8, bf16 -> 16, int8/u8/fp8 -> 32.
    align = SUBLANES
    for d in (o.dtype, t.dtype):
        align = max(align, 32 // jnp.dtype(d).itemsize)

    # Lane-dense (rows, 128) view.  Pad only when the flat length is not already
    # aligned (<= align*128 - 1 extra elements); pad values are masked in-kernel.
    n_pad = _round_up(n, align * LANES)
    if n_pad != n:
        o = jnp.pad(o, (0, n_pad - n))
        t = jnp.pad(t, (0, n_pad - n))
    rows = n_pad // LANES
    o2 = o.reshape(rows, LANES)
    t2 = t.reshape(rows, LANES)

    block_rows = min(_round_up(max(int(max_block_rows), 1), align), rows)
    blocks_total = pl.cdiv(rows, block_rows)
    num_splits = 2 if blocks_total >= 2 else 1          # v7x: one per TensorCore
    bps = pl.cdiv(blocks_total, num_splits)             # blocks per split

    needs_mask = ((n_pad != n)
                  or (rows % block_rows != 0)
                  or (blocks_total % num_splits != 0))

    def in_map(i, k):
        # Clamp so a redundant trailing block of an uneven split stays in bounds;
        # its contribution is zeroed by the in-kernel mask.
        return (jnp.minimum(i * bps + k, blocks_total - 1), 0)

    kernel = _make_kernel(n, block_rows, bps, needs_mask)

    inter_parts, denom_parts = pl.pallas_call(
        kernel,
        out_shape=(
            jax.ShapeDtypeStruct((num_splits, 1, 1), jnp.float32),
            jax.ShapeDtypeStruct((num_splits, 1, 1), jnp.float32),
        ),
        grid_spec=pltpu.PrefetchScalarGridSpec(
            num_scalar_prefetch=0,
            grid=(num_splits, bps),
            in_specs=[
                pl.BlockSpec((block_rows, LANES), in_map),
                pl.BlockSpec((block_rows, LANES), in_map),
            ],
            out_specs=[
                pl.BlockSpec((1, 1, 1), lambda i, k: (i, 0, 0)),
                pl.BlockSpec((1, 1, 1), lambda i, k: (i, 0, 0)),
            ],
            scratch_shapes=[
                pltpu.VMEM((SUBLANES, LANES), jnp.float32),   # intersection acc
                pltpu.VMEM((SUBLANES, LANES), jnp.float32),   # sum(p)+sum(t) acc
            ],
        ),
        compiler_params=pltpu.CompilerParams(
            dimension_semantics=("parallel", "arbitrary"),
            vmem_limit_bytes=32 * 1024 * 1024,
        ),
    )(o2, t2)

    inter = jnp.sum(inter_parts)
    denom = jnp.sum(denom_parts)
    dice = (2.0 * inter + smooth) / (denom + smooth)
    return 1.0 - dice


def reference(outputs, targets):
    """Pure-JAX mirror of the PyTorch DiceLoss.forward."""
    smooth = 1.0
    p = jax.nn.sigmoid(outputs.astype(jnp.float32)).reshape(-1)
    t = targets.astype(jnp.float32).reshape(-1)
    inter = jnp.sum(p * t)
    dice = (2.0 * inter + smooth) / (jnp.sum(p) + jnp.sum(t) + smooth)
    return 1.0 - dice


if __name__ == "__main__":
    key = jax.random.PRNGKey(0)
    k1, k2, k3, k4 = jax.random.split(key, 4)

    # Canonical small segmentation shapes: batch=2, channels=4, 16x16 spatial.
    N, C, H, W = 2, 4, 16, 16
    outputs = jax.random.normal(k1, (N, C, H, W), dtype=jnp.float32)              # logits
    targets = jax.random.bernoulli(k2, 0.3, (N, C, H, W)).astype(jnp.float32)     # 0/1 mask

    # 1) Aligned input, single block, single split (the hot unmasked path).
    loss = jax.block_until_ready(dice_loss(outputs, targets))
    ref = reference(outputs, targets)
    assert loss.shape == ()
    assert jnp.allclose(loss, ref, atol=1e-5, rtol=1e-5), f"{loss} vs {ref}"

    # 2) Same data with tiny blocks: multi-block reduction + 2-way core split.
    loss2 = jax.block_until_ready(dice_loss(outputs, targets, max_block_rows=8))
    assert jnp.allclose(loss2, ref, atol=1e-5, rtol=1e-5), f"{loss2} vs {ref}"

    # 3) Ragged length (3000 elems) with odd block count: exercises the in-kernel
    #    tail mask and the clamped redundant block of an uneven split.
    o3 = jax.random.normal(k3, (3000,), dtype=jnp.float32)
    t3 = jax.random.bernoulli(k4, 0.5, (3000,)).astype(jnp.float32)
    loss3 = jax.block_until_ready(dice_loss(o3, t3, max_block_rows=8))
    ref3 = reference(o3, t3)
    assert jnp.allclose(loss3, ref3, atol=1e-5, rtol=1e-5), f"{loss3} vs {ref3}"

    print("KERNEL_OK")
</pallas_src>

<mosaic_0001>
module attributes {stable_mosaic.version = 11 : i64} {
  func.func @kernel(%arg0: i32, %arg1: i32, %arg2: memref<16x128xf32, #tpu.memory_space<vmem>>, %arg3: memref<16x128xf32, #tpu.memory_space<vmem>>, %arg4: memref<1x1x1xf32, #tpu.memory_space<vmem>>, %arg5: memref<1x1x1xf32, #tpu.memory_space<vmem>>, %arg6: memref<8x128xf32, #tpu.memory_space<vmem>>, %arg7: memref<8x128xf32, #tpu.memory_space<vmem>>) attributes {dimension_semantics = [#tpu.dimension_semantics<parallel>, #tpu.dimension_semantics<arbitrary>], iteration_bounds = array<i64: 1, 1>, scalar_prefetch = 0 : i64, scratch_operands = 2 : i64, tpu.core_type = #tpu.core_type<tc>, window_params = [{transform_indices = @transform_0, window_bounds = array<i64: 16, 128>}, {transform_indices = @transform_1, window_bounds = array<i64: 16, 128>}, {transform_indices = @transform_2, window_bounds = array<i64: 1, 1, 1>}, {transform_indices = @transform_3, window_bounds = array<i64: 1, 1, 1>}]} {
    %c0_i32 = arith.constant 0 : i32
    %0 = arith.cmpi eq, %arg1, %c0_i32 : i32
    %1 = arith.extui %0 : i1 to i32
    %c0_i32_0 = arith.constant 0 : i32
    %2 = arith.cmpi ne, %1, %c0_i32_0 : i32
    scf.if %2 {
      %cst_18 = arith.constant 0.000000e+00 : f32
      %27 = vector.broadcast %cst_18 : f32 to vector<8x128xf32>
      %c0_19 = arith.constant 0 : index
      %c0_20 = arith.constant 0 : index
      %28 = vector.load %arg6[%c0_19, %c0_20] : memref<8x128xf32, #tpu.memory_space<vmem>>, vector<8x128xf32>
      tpu.vector_store %arg6[%c0_19, %c0_20], %27 {strides = array<i32>} : memref<8x128xf32, #tpu.memory_space<vmem>>, vector<8x128xf32>,
      %cst_21 = arith.constant 0.000000e+00 : f32
      %29 = vector.broadcast %cst_21 : f32 to vector<8x128xf32>
      %c0_22 = arith.constant 0 : index
      %c0_23 = arith.constant 0 : index
      %30 = vector.load %arg7[%c0_22, %c0_23] : memref<8x128xf32, #tpu.memory_space<vmem>>, vector<8x128xf32>
      tpu.vector_store %arg7[%c0_22, %c0_23], %29 {strides = array<i32>} : memref<8x128xf32, #tpu.memory_space<vmem>>, vector<8x128xf32>,
    } else {
    }
    %c0 = arith.constant 0 : index
    %c0_1 = arith.constant 0 : index
    %3 = vector.load %arg2[%c0, %c0_1] : memref<16x128xf32, #tpu.memory_space<vmem>>, vector<16x128xf32>
    %c0_2 = arith.constant 0 : index
    %c0_3 = arith.constant 0 : index
    %4 = vector.load %arg3[%c0_2, %c0_3] : memref<16x128xf32, #tpu.memory_space<vmem>>, vector<16x128xf32>
    %cst = arith.constant 5.000000e-01 : f32
    %5 = vector.broadcast %cst : f32 to vector<16x128xf32>
    %6 = arith.mulf %5, %3 : vector<16x128xf32>
    %7 = math.tanh %6 : vector<16x128xf32>
    %cst_4 = arith.constant 5.000000e-01 : f32
    %8 = vector.broadcast %cst_4 : f32 to vector<16x128xf32>
    %9 = arith.mulf %8, %7 : vector<16x128xf32>
    %cst_5 = arith.constant 5.000000e-01 : f32
    %10 = vector.broadcast %cst_5 : f32 to vector<16x128xf32>
    %11 = arith.addf %9, %10 : vector<16x128xf32>
    %12 = vector.shape_cast %11 : vector<16x128xf32> to vector<2x8x128xf32>
    %13 = vector.shape_cast %4 : vector<16x128xf32> to vector<2x8x128xf32>
    %c0_6 = arith.constant 0 : index
    %c0_7 = arith.constant 0 : index
    %14 = vector.load %arg6[%c0_6, %c0_7] : memref<8x128xf32, #tpu.memory_space<vmem>>, vector<8x128xf32>
    %15 = arith.mulf %12, %13 : vector<2x8x128xf32>
    %cst_8 = arith.constant dense<0.000000e+00> : vector<8x128xf32>
    %16 = vector.multi_reduction <add>, %15, %cst_8 [0] : vector<2x8x128xf32> to vector<8x128xf32>
    %17 = arith.addf %14, %16 : vector<8x128xf32>
    %c0_9 = arith.constant 0 : index
    %c0_10 = arith.constant 0 : index
    %18 = vector.load %arg6[%c0_9, %c0_10] : memref<8x128xf32, #tpu.memory_space<vmem>>, vector<8x128xf32>
    tpu.vector_store %arg6[%c0_9, %c0_10], %17 {strides = array<i32>} : memref<8x128xf32, #tpu.memory_space<vmem>>, vector<8x128xf32>,
    %c0_11 = arith.constant 0 : index
    %c0_12 = arith.constant 0 : index
    %19 = vector.load %arg7[%c0_11, %c0_12] : memref<8x128xf32, #tpu.memory_space<vmem>>, vector<8x128xf32>
    %20 = arith.addf %12, %13 : vector<2x8x128xf32>
    %cst_13 = arith.constant dense<0.000000e+00> : vector<8x128xf32>
    %21 = vector.multi_reduction <add>, %20, %cst_13 [0] : vector<2x8x128xf32> to vector<8x128xf32>
    %22 = arith.addf %19, %21 : vector<8x128xf32>
    %c0_14 = arith.constant 0 : index
    %c0_15 = arith.constant 0 : index
    %23 = vector.load %arg7[%c0_14, %c0_15] : memref<8x128xf32, #tpu.memory_space<vmem>>, vector<8x128xf32>
    tpu.vector_store %arg7[%c0_14, %c0_15], %22 {strides = array<i32>} : memref<8x128xf32, #tpu.memory_space<vmem>>, vector<8x128xf32>,
    %c0_i32_16 = arith.constant 0 : i32
    %24 = arith.cmpi eq, %arg1, %c0_i32_16 : i32
    %25 = arith.extui %24 : i1 to i32
    %c0_i32_17 = arith.constant 0 : i32
    %26 = arith.cmpi ne, %25, %c0_i32_17 : i32
    scf.if %26 {
      %c0_18 = arith.constant 0 : index
      %c0_19 = arith.constant 0 : index
      %27 = vector.load %arg6[%c0_18, %c0_19] : memref<8x128xf32, #tpu.memory_space<vmem>>, vector<8x128xf32>
      %28 = vector.shape_cast %27 : vector<8x128xf32> to vector<1x8x128xf32>
      %cst_20 = arith.constant dense<0.000000e+00> : vector<1xf32>
      %29 = vector.multi_reduction <add>, %28, %cst_20 [1, 2] : vector<1x8x128xf32> to vector<1xf32>
      %30 = vector.shape_cast %29 : vector<1xf32> to vector<1x1x1xf32>
      %31 = vector.extract %30[0, 0, 0] : f32 from vector<1x1x1xf32>
      %32 = vector.broadcast %31 : f32 to vector<1x1x1xf32>
      %c0_21 = arith.constant 0 : index
      %c0_22 = arith.constant 0 : index
      %c0_23 = arith.constant 0 : index
      %33 = vector.load %arg4[%c0_21, %c0_22, %c0_23] : memref<1x1x1xf32, #tpu.memory_space<vmem>>, vector<1x1x1xf32>
      tpu.vector_store %arg4[%c0_21, %c0_22, %c0_23], %32 {strides = array<i32>} : memref<1x1x1xf32, #tpu.memory_space<vmem>>, vector<1x1x1xf32>,
      %c0_24 = arith.constant 0 : index
      %c0_25 = arith.constant 0 : index
      %34 = vector.load %arg7[%c0_24, %c0_25] : memref<8x128xf32, #tpu.memory_space<vmem>>, vector<8x128xf32>
      %35 = vector.shape_cast %34 : vector<8x128xf32> to vector<1x8x128xf32>
      %cst_26 = arith.constant dense<0.000000e+00> : vector<1xf32>
      %36 = vector.multi_reduction <add>, %35, %cst_26 [1, 2] : vector<1x8x128xf32> to vector<1xf32>
      %37 = vector.shape_cast %36 : vector<1xf32> to vector<1x1x1xf32>
      %38 = vector.extract %37[0, 0, 0] : f32 from vector<1x1x1xf32>
      %39 = vector.broadcast %38 : f32 to vector<1x1x1xf32>
      %c0_27 = arith.constant 0 : index
      %c0_28 = arith.constant 0 : index
      %c0_29 = arith.constant 0 : index
      %40 = vector.load %arg5[%c0_27, %c0_28, %c0_29] : memref<1x1x1xf32, #tpu.memory_space<vmem>>, vector<1x1x1xf32>
      tpu.vector_store %arg5[%c0_27, %c0_28, %c0_29], %39 {strides = array<i32>} : memref<1x1x1xf32, #tpu.memory_space<vmem>>, vector<1x1x1xf32>,
    } else {
    }
    return
  }
  func.func @transform_0(%arg0: i32, %arg1: i32) -> (i32, i32) {
    %c1_i32 = arith.constant 1 : i32
    %0 = arith.muli %arg0, %c1_i32 : i32
    %1 = arith.addi %0, %arg1 : i32
    %c0_i32 = arith.constant 0 : i32
    %2 = arith.minsi %1, %c0_i32 : i32
    %c0_i32_0 = arith.constant 0 : i32
    %c0_i32_1 = arith.constant 0 : i32
    return %2, %c0_i32_0 : i32, i32
  }
  func.func @transform_1(%arg0: i32, %arg1: i32) -> (i32, i32) {
    %c1_i32 = arith.constant 1 : i32
    %0 = arith.muli %arg0, %c1_i32 : i32
    %1 = arith.addi %0, %arg1 : i32
    %c0_i32 = arith.constant 0 : i32
    %2 = arith.minsi %1, %c0_i32 : i32
    %c0_i32_0 = arith.constant 0 : i32
    %c0_i32_1 = arith.constant 0 : i32
    return %2, %c0_i32_0 : i32, i32
  }
  func.func @transform_2(%arg0: i32, %arg1: i32) -> (i32, i32, i32) {
    %c0_i32 = arith.constant 0 : i32
    %c0_i32_0 = arith.constant 0 : i32
    %c0_i32_1 = arith.constant 0 : i32
    return %arg0, %c0_i32, %c0_i32_0 : i32, i32, i32
  }
  func.func @transform_3(%arg0: i32, %arg1: i32) -> (i32, i32, i32) {
    %c0_i32 = arith.constant 0 : i32
    %c0_i32_0 = arith.constant 0 : i32
    %c0_i32_1 = arith.constant 0 : i32
    return %arg0, %c0_i32, %c0_i32_0 : i32, i32, i32
  }
}

</mosaic_0001>

<llo_original>
// kernel: tpu_custom_call.1
$region0: #{tpu_custom_call.1}
  #allocation0 [shape = 'u32[]', space=smem, size = 0x4, offset = 0x4, fixed_abs, tag = 'smem constant byte address 0x4 - core index']
  #allocation1 [shape = 'u32[144,128]{1,0:T(1,128)}', space=vmem, size = 0x12000, scoped, tag = 'internal scratch']
  #allocation2 [shape = 'f32[8,128]{1,0:T(8,128)}', space=vmem, size = 0x1000, scoped, tag = 'scratch operand']
  #allocation3 [shape = 'f32[8,128]{1,0:T(8,128)}', space=vmem, size = 0x1000, scoped, tag = 'scratch operand']
  %s0 = inlined_call_operand.hbm [shape: f32[16,128], index: 0, kind: input, shape index: {}]
  %s1 = inlined_call_operand.hbm [shape: f32[16,128], index: 1, kind: input, shape index: {}]
  %s2 = inlined_call_operand.hbm [shape: f32[1,1,1], index: 2, kind: output, shape index: {0}]
  %s3 = inlined_call_operand.hbm [shape: f32[1,1,1], index: 3, kind: output, shape index: {1}]
  %4 = xla_tuple %s2, %s3
  %s5 = sld [smem:[#allocation0]]
  $region42: #{tpu_custom_call.1} parent=0
    _
  %s7 = ssub.s32 1, %s5
  %s8 = scalar_select 0, %s7, %s5
  $region1: #{tpu_custom_call.1} parent=0
    #allocation4 [shape = 'u8[8192]{0}', space=vmem, size = 0x2000, scoped, tag = 'input window, operand 0, single buffered']
    #allocation5 [shape = 's32[1]{0}', space=sflag, size = 0x4, scoped, tag = 'scoped memory for tpu_custom_call.1']
    #allocation6 [shape = 's32[1]{0}', space=sflag, size = 0x4, scoped, tag = 'scoped memory for tpu_custom_call.1']
    #allocation7 [shape = 'u8[8192]{0}', space=vmem, size = 0x2000, scoped, tag = 'input window, operand 1, single buffered']
    #allocation8 [shape = 's32[1]{0}', space=sflag, size = 0x4, scoped, tag = 'scoped memory for tpu_custom_call.1']
    #allocation9 [shape = 'u8[512]{0}', space=vmem, size = 0x400, scoped, tag = 'output window, operand 0, single buffered']
    #allocation10 [shape = 'u8[512]{0}', space=vmem, size = 0x400, scoped, tag = 'output window, operand 1, single buffered']
    #allocation11 [shape = 's32[1]{0}', space=sflag, size = 0x4, scoped, tag = 'scoped memory for tpu_custom_call.1']
    %9 = vsyncpa [#allocation5], 0
    %10 = vsyncpa [#allocation8], 0
    %11 = vsyncpa [#allocation6], 0
    %12 = vsyncpa [#allocation11], 0
    // Predicated region
    $region2: #{tpu_custom_call.1} parent=1 // pred_check
      _
    $region3: #{tpu_custom_call.1} parent=1 // pred_check_branch
      %14 = sbr.rel (0) target = $region5
    $region4: #{tpu_custom_call.1} parent=1 // pred_region
      %s15 = sadd.s32 0, 0
      %p16 = scmp.lt.s32.totalorder %s15, 0
      %s17 = scalar_select %p16, %s15, 0
      %s18 = smul.u32 2, %s17
      %s20 = ssub.s32 256, 256
      %21 = vsyncadd [#allocation5], %s20
      %s22 = smul.addr %s18, 128
      %s23 = scalar_lea.hbm %s0, %s22
      %s24 = sshll.u32 [#allocation4], 4
      %s25 = int_to_ptr.vmem [resolvable:$true] %s24
      %30 = dma.hbm_to_vmem [thread:$0]  %s23, 256, %s25, [#allocation5], 128, 128, 8
    $region5: #{tpu_custom_call.1} parent=1 // pred_fallthru
      _
    // Predicated region
    $region6: #{tpu_custom_call.1} parent=1 // pred_check
      _
    $region7: #{tpu_custom_call.1} parent=1 // pred_check_branch
      %32 = sbr.rel (0) target = $region9
    $region8: #{tpu_custom_call.1} parent=1 // pred_region
      %s33 = sadd.s32 0, 0
      %p34 = scmp.lt.s32.totalorder %s33, 0
      %s35 = scalar_select %p34, %s33, 0
      %s36 = smul.u32 2, %s35
      %s38 = ssub.s32 256, 256
      %39 = vsyncadd [#allocation8], %s38
      %s40 = smul.addr %s36, 128
      %s41 = scalar_lea.hbm %s1, %s40
      %s42 = sshll.u32 [#allocation7], 4
      %s43 = int_to_ptr.vmem [resolvable:$true] %s42
      %48 = dma.hbm_to_vmem [thread:$0]  %s41, 256, %s43, [#allocation8], 128, 128, 8
    $region9: #{tpu_custom_call.1} parent=1 // pred_fallthru
      _
    // Predicated region
    $region10: #{tpu_custom_call.1} parent=1 // pred_check
      _
    $region11: #{tpu_custom_call.1} parent=1 // pred_check_branch
      %50 = sbr.rel (0) target = $region13
    $region12: #{tpu_custom_call.1} parent=1 // pred_region
      %51 = dma.done [#allocation5], 256
    $region13: #{tpu_custom_call.1} parent=1 // pred_fallthru
      _
    // Predicated region
    $region14: #{tpu_custom_call.1} parent=1 // pred_check
      _
    $region15: #{tpu_custom_call.1} parent=1 // pred_check_branch
      %53 = sbr.rel (0) target = $region17
    $region16: #{tpu_custom_call.1} parent=1 // pred_region
      %54 = dma.done [#allocation8], 256
    $region17: #{tpu_custom_call.1} parent=1 // pred_fallthru
      _
    %s55 = sadd.s32 0, 0
    %p56 = scmp.lt.s32.totalorder %s55, 0
    %s57 = scalar_select %p56, %s55, 0
    %s58 = smul.u32 2, %s57
    %s59 = sadd.s32 0, 0
    %p60 = scmp.lt.s32.totalorder %s59, 0
    %s61 = scalar_select %p60, %s59, 0
    %s62 = smul.u32 2, %s61
    %p63 = scmp.eq.s32.totalorder 0, 0
    // Predicated region
    $region18: #{tpu_custom_call.1} parent=1 // pred_check
      %p64 = pneg %p63
    $region19: #{tpu_custom_call.1} parent=1 // pred_check_branch
      %66 = sbr.rel (%p64) target = $region21
    $region20: #{tpu_custom_call.1} parent=1 // pred_region
      %67 = vst [vmem:[#allocation2] sm:$0xff] 0.0
      %68 = vst [vmem:[#allocation3] sm:$0xff] 0.0
    $region21: #{tpu_custom_call.1} parent=1 // pred_fallthru
      _
    %v69 = vld [vmem:[#allocation4] sm:$0xff]
    %v70 = vld [vmem:[#allocation4 + $0x8] sm:$0xff]
    %v71 = vld [vmem:[#allocation7] sm:$0xff]
    %v72 = vld [vmem:[#allocation7 + $0x8] sm:$0xff]
    %v73 = vmul.f32 %v69, 0.5
    %v74 = vmul.f32 %v70, 0.5
    %v75 = vtanh.pop %v73
    %v76 = vtanh.pop %v74
    %v77 = vmul.f32 %v75, 0.5
    %v78 = vmul.f32 %v76, 0.5
    %v79 = vadd.f32 %v77, 0.5
    %v80 = vadd.f32 %v78, 0.5
    %v81 = vld [vmem:[#allocation2] sm:$0xff]
    %v82 = vmul.f32 %v79, %v71
    %v83 = vmul.f32 %v80, %v72
    %v84 = vadd.f32 %v82, %v83
    %v85 = vadd.f32 %v81, %v84
    %86 = vst [vmem:[#allocation2] sm:$0xff] %v85
    %v87 = vld [vmem:[#allocation3] sm:$0xff]
    %v88 = vadd.f32 %v79, %v71
    %v89 = vadd.f32 %v80, %v72
    %v90 = vadd.f32 %v88, %v89
    %v91 = vadd.f32 %v87, %v90
    %92 = vst [vmem:[#allocation3] sm:$0xff] %v91
    // Predicated region
    $region22: #{tpu_custom_call.1} parent=1 // pred_check
      %p93 = pneg %p63
    $region23: #{tpu_custom_call.1} parent=1 // pred_check_branch
      %95 = sbr.rel (%p93) target = $region25
    $region24: #{tpu_custom_call.1} parent=1 // pred_region
      %v96 = vld [vmem:[#allocation2] sm:$0xff]
      %97 = vadd.xlane.f32.xlu0 %v96
      %v98 = vpop.xlane.xlu0 %97
      %v99 = vrot.slane %v98, 4
      %v100 = vadd.f32 %v98, %v99
      %v101 = vrot.slane %v100, 2
      %v102 = vadd.f32 %v100, %v101
      %v103 = vrot.slane %v102, 1
      %v104 = vadd.f32 %v102, %v103
      %s105 = vtos %v104
      %v106 = vstv %s105
      %vm107 = vcmask 0
      %108 = vst.msk [vmem:[#allocation9] sm:$0x1] %vm107, %v106
      %v109 = vld [vmem:[#allocation3] sm:$0xff]
      %110 = vadd.xlane.f32.xlu0 %v109
      %v111 = vpop.xlane.xlu0 %110
      %v112 = vrot.slane %v111, 4
      %v113 = vadd.f32 %v111, %v112
      %v114 = vrot.slane %v113, 2
      %v115 = vadd.f32 %v113, %v114
      %v116 = vrot.slane %v115, 1
      %v117 = vadd.f32 %v115, %v116
      %s118 = vtos %v117
      %v119 = vstv %s118
      %120 = vst.msk [vmem:[#allocation10] sm:$0x1] %vm107, %v119
    $region25: #{tpu_custom_call.1} parent=1 // pred_fallthru
      _
    // Predicated region
    $region26: #{tpu_custom_call.1} parent=1 // pred_check
      _
    $region27: #{tpu_custom_call.1} parent=1 // pred_check_branch
      %122 = sbr.rel (0) target = $region29
    $region28: #{tpu_custom_call.1} parent=1 // pred_region
      %s124 = ssub.s32 16, 16
      %125 = vsyncadd [#allocation6], %s124
      %s127 = sshll.u32 [#allocation9], 4
      %s128 = int_to_ptr.vmem [resolvable:$true] %s127
      %130 = dma.vmem_to_hbm [thread:$0]  %s128, 16, %s2, [#allocation6]
    $region29: #{tpu_custom_call.1} parent=1 // pred_fallthru
      _
    // Predicated region
    $region30: #{tpu_custom_call.1} parent=1 // pred_check
      _
    $region31: #{tpu_custom_call.1} parent=1 // pred_check_branch
      %132 = sbr.rel (0) target = $region33
    $region32: #{tpu_custom_call.1} parent=1 // pred_region
      %s134 = ssub.s32 16, 16
      %135 = vsyncadd [#allocation11], %s134
      %s137 = sshll.u32 [#allocation10], 4
      %s138 = int_to_ptr.vmem [resolvable:$true] %s137
      %140 = dma.vmem_to_hbm [thread:$0]  %s138, 16, %s3, [#allocation11]
    $region33: #{tpu_custom_call.1} parent=1 // pred_fallthru
      _
    // Predicated region
    $region34: #{tpu_custom_call.1} parent=1 // pred_check
      _
    $region35: #{tpu_custom_call.1} parent=1 // pred_check_branch
      %142 = sbr.rel (0) target = $region37
    $region36: #{tpu_custom_call.1} parent=1 // pred_region
      %143 = dma.done [#allocation6], 16
    $region37: #{tpu_custom_call.1} parent=1 // pred_fallthru
      _
    // Predicated region
    $region38: #{tpu_custom_call.1} parent=1 // pred_check
      _
    $region39: #{tpu_custom_call.1} parent=1 // pred_check_branch
      %145 = sbr.rel (0) target = $region41
    $region40: #{tpu_custom_call.1} parent=1 // pred_region
      %146 = dma.done [#allocation11], 16
    $region41: #{tpu_custom_call.1} parent=1 // pred_fallthru
      _
    %147 = vsyncpa [#allocation5], 1
    %148 = vsyncpa [#allocation8], 1
    %149 = vsyncpa [#allocation6], 1
    %150 = vsyncpa [#allocation11], 1

</llo_original>
